<compile_context>
chip_gen: v5e
topology: v5e:2x2
jax: 0.10.0
libtpu: 0.0.40
codegen_flags: <defaults>
</compile_context>

<pallas_src>
import functools

import jax
import jax.numpy as jnp
from jax.experimental import pallas as pl
from jax.experimental.pallas import tpu as pltpu


def _round_up(n, m):
    return ((n + m - 1) // m) * m


def dqn_mlp_kernel(x_ref, w1_ref, b1_ref, w2_ref, b2_ref, w3_ref, b3_ref, o_ref):
    """Fused forward: relu(relu(x@W1+b1)@W2+b2)@W3+b3 for one batch tile.

    Weights arrive in bf16; activations are cast to bf16 only at the MXU input,
    accumulation is f32, and all VPU work (bias add, ReLU) stays f32.
    """
    x = x_ref[...].astype(jnp.bfloat16)

    h1 = jnp.dot(x, w1_ref[...], preferred_element_type=jnp.float32) + b1_ref[...]
    h1 = jnp.maximum(h1, 0.0)                                   # f32 on VPU

    h2 = (
        jnp.dot(h1.astype(jnp.bfloat16), w2_ref[...],
                preferred_element_type=jnp.float32)
        + b2_ref[...]
    )
    h2 = jnp.maximum(h2, 0.0)                                   # f32 on VPU

    o_ref[...] = (
        jnp.dot(h2.astype(jnp.bfloat16), w3_ref[...],
                preferred_element_type=jnp.float32)
        + b3_ref[...]
    ).astype(o_ref.dtype)


def prepare_params(params):
    """One-time parameter prep, hoisted out of the per-call forward path:
      * zero-pad W3/b3 to a 128-lane output width (lane-dense unmasked stores),
      * cast weights to bf16 (MXU inputs), biases to (1, out) f32 rows.
    Returns (prepared_param_tuple, action_dim)."""
    w1, b1, w2, b2, w3, b3 = params
    hidden, action_dim = w3.shape
    out_pad = _round_up(action_dim, 128)

    w3p = (jnp.zeros((hidden, out_pad), jnp.bfloat16)
           .at[:, :action_dim].set(w3.astype(jnp.bfloat16)))
    b3p = (jnp.zeros((1, out_pad), jnp.float32)
           .at[:, :action_dim].set(jnp.reshape(b3, (1, -1)).astype(jnp.float32)))

    prepared = (
        w1.astype(jnp.bfloat16), jnp.reshape(b1, (1, -1)).astype(jnp.float32),
        w2.astype(jnp.bfloat16), jnp.reshape(b2, (1, -1)).astype(jnp.float32),
        w3p, b3p,
    )
    return prepared, action_dim


def _choose_tiling(batch, max_tile=512):
    """Adaptive batch tiling.
      * batch <= 8: single tiny tile (no pad-to-128 waste for DQN-sized calls).
      * otherwise: aim for >= 2 tiles (v7x: both TensorCores on the parallel
        batch axis), capped at max_tile rows so grid-step overhead amortizes."""
    padded = _round_up(max(batch, 1), 8)
    if padded <= 8:
        return padded, padded
    tile = min(max_tile, _round_up((padded + 1) // 2, 8))
    padded = _round_up(padded, tile)
    return tile, padded


@functools.partial(jax.jit, static_argnames=("action_dim",))
def dqn_forward(x, prepared, *, action_dim):
    """Fused DQN MLP forward. `prepared` comes from prepare_params (bf16 weights,
    f32 biases, lane-padded final layer). Pads batch to the tile size, runs the
    kernel over a 1-D batch grid, and slices padding back off."""
    w1b, b1f, w2b, b2f, w3b, b3f = prepared
    batch, obs_dim = x.shape
    hidden = w1b.shape[1]
    out_pad = w3b.shape[1]

    tile_b, padded_batch = _choose_tiling(batch)
    if padded_batch != batch:
        x = jnp.pad(x, ((0, padded_batch - batch), (0, 0)))
    num_tiles = padded_batch // tile_b

    flops = 2 * padded_batch * (obs_dim * hidden + hidden * hidden + hidden * out_pad)
    bytes_accessed = (
        padded_batch * obs_dim * 4 + padded_batch * out_pad * 4          # x, out
        + (w1b.size + w2b.size + w3b.size) * 2                           # bf16 weights
        + (b1f.size + b2f.size + b3f.size) * 4                           # f32 biases
    )

    out = pl.pallas_call(
        dqn_mlp_kernel,
        out_shape=jax.ShapeDtypeStruct((padded_batch, out_pad), jnp.float32),
        grid=(num_tiles,),
        in_specs=[
            pl.BlockSpec((tile_b, obs_dim), lambda i: (i, 0)),     # x: tiled over batch
            pl.BlockSpec((obs_dim, hidden), lambda i: (0, 0)),     # W1: VMEM-resident
            pl.BlockSpec((1, hidden), lambda i: (0, 0)),           # b1: VMEM-resident
            pl.BlockSpec((hidden, hidden), lambda i: (0, 0)),      # W2: VMEM-resident
            pl.BlockSpec((1, hidden), lambda i: (0, 0)),           # b2: VMEM-resident
            pl.BlockSpec((hidden, out_pad), lambda i: (0, 0)),     # W3 (padded): resident
            pl.BlockSpec((1, out_pad), lambda i: (0, 0)),          # b3 (padded): resident
        ],
        out_specs=pl.BlockSpec((tile_b, out_pad), lambda i: (i, 0)),
        compiler_params=pltpu.CompilerParams(
            dimension_semantics=("parallel",),                      # v7x: both TCs
        ),
        cost_estimate=pl.CostEstimate(
            flops=flops, transcendentals=0, bytes_accessed=bytes_accessed
        ),
    )(x, w1b, b1f, w2b, b2f, w3b, b3f)

    return out[:batch, :action_dim]


def init_params(key, obs_dim, action_dim, hidden_dim=128):
    """Deterministic init mimicking PyTorch nn.Linear default:
    U(-1/sqrt(fan_in), 1/sqrt(fan_in)) for weights and biases (f32 storage)."""
    def linear_init(k, fan_in, fan_out):
        kw, kb = jax.random.split(k)
        bound = 1.0 / jnp.sqrt(fan_in)
        w = jax.random.uniform(kw, (fan_in, fan_out), jnp.float32, -bound, bound)
        b = jax.random.uniform(kb, (1, fan_out), jnp.float32, -bound, bound)
        return w, b

    k1, k2, k3 = jax.random.split(key, 3)
    w1, b1 = linear_init(k1, obs_dim, hidden_dim)
    w2, b2 = linear_init(k2, hidden_dim, hidden_dim)
    w3, b3 = linear_init(k3, hidden_dim, action_dim)
    return (w1, b1, w2, b2, w3, b3)


def reference_forward(x, params):
    """Plain-JAX f32 reference matching the PyTorch module's math."""
    w1, b1, w2, b2, w3, b3 = params
    h1 = jnp.maximum(x @ w1 + b1, 0.0)
    h2 = jnp.maximum(h1 @ w2 + b2, 0.0)
    return h2 @ w3 + b3


if __name__ == "__main__":
    key = jax.random.PRNGKey(0)
    obs_dim, action_dim, hidden_dim = 8, 4, 128   # module default hidden_dim=128
    batch = 2

    kx, kp, kx2 = jax.random.split(key, 3)
    x = jax.random.normal(kx, (batch, obs_dim), jnp.float32)
    params = init_params(kp, obs_dim, action_dim, hidden_dim)

    # One-time parameter prep (hoisted off the per-call path).
    prepared, action_dim = prepare_params(params)
    prepared = jax.block_until_ready(prepared)

    # Small-batch (acting) path: single 8-row tile.
    out = jax.block_until_ready(dqn_forward(x, prepared, action_dim=action_dim))
    ref = reference_forward(x, params)
    assert out.shape == (batch, action_dim), out.shape
    # bf16 MXU inputs with f32 accumulation vs pure-f32 reference -> loose tolerance.
    assert jnp.allclose(out, ref, atol=2e-2, rtol=2e-2), "small-batch mismatch"

    # Larger-batch (replay) path: exercises multi-tile grid + batch padding.
    big_batch = 100
    x_big = jax.random.normal(kx2, (big_batch, obs_dim), jnp.float32)
    out_big = jax.block_until_ready(dqn_forward(x_big, prepared, action_dim=action_dim))
    ref_big = reference_forward(x_big, params)
    assert out_big.shape == (big_batch, action_dim), out_big.shape
    assert jnp.allclose(out_big, ref_big, atol=2e-2, rtol=2e-2), "big-batch mismatch"

    print("KERNEL_OK")
</pallas_src>

<mosaic_0001>
module attributes {stable_mosaic.version = 11 : i64} {
  func.func @dqn_mlp_kernel(%arg0: i32, %arg1: memref<8x8xf32, #tpu.memory_space<vmem>>, %arg2: memref<8x128xbf16, #tpu.memory_space<vmem>>, %arg3: memref<1x128xf32, #tpu.memory_space<vmem>>, %arg4: memref<128x128xbf16, #tpu.memory_space<vmem>>, %arg5: memref<1x128xf32, #tpu.memory_space<vmem>>, %arg6: memref<128x128xbf16, #tpu.memory_space<vmem>>, %arg7: memref<1x128xf32, #tpu.memory_space<vmem>>, %arg8: memref<8x128xf32, #tpu.memory_space<vmem>>) attributes {dimension_semantics = [#tpu.dimension_semantics<parallel>], iteration_bounds = array<i64: 1>, scalar_prefetch = 0 : i64, scratch_operands = 0 : i64, tpu.core_type = #tpu.core_type<tc>, window_params = [{transform_indices = @transform_0, window_bounds = array<i64: 8, 8>}, {pipeline_mode = #tpu.pipeline_mode<synchronous>, transform_indices = @transform_1, window_bounds = array<i64: 8, 128>}, {pipeline_mode = #tpu.pipeline_mode<synchronous>, transform_indices = @transform_2, window_bounds = array<i64: 1, 128>}, {pipeline_mode = #tpu.pipeline_mode<synchronous>, transform_indices = @transform_3, window_bounds = array<i64: 128, 128>}, {pipeline_mode = #tpu.pipeline_mode<synchronous>, transform_indices = @transform_4, window_bounds = array<i64: 1, 128>}, {pipeline_mode = #tpu.pipeline_mode<synchronous>, transform_indices = @transform_5, window_bounds = array<i64: 128, 128>}, {pipeline_mode = #tpu.pipeline_mode<synchronous>, transform_indices = @transform_6, window_bounds = array<i64: 1, 128>}, {transform_indices = @transform_7, window_bounds = array<i64: 8, 128>}]} {
    %c0 = arith.constant 0 : index
    %c0_0 = arith.constant 0 : index
    %0 = vector.load %arg1[%c0, %c0_0] : memref<8x8xf32, #tpu.memory_space<vmem>>, vector<8x8xf32>
    %1 = arith.truncf %0 : vector<8x8xf32> to vector<8x8xbf16>
    %c0_1 = arith.constant 0 : index
    %c0_2 = arith.constant 0 : index
    %2 = vector.load %arg2[%c0_1, %c0_2] : memref<8x128xbf16, #tpu.memory_space<vmem>>, vector<8x128xbf16>
    %cst = arith.constant dense<0.000000e+00> : vector<8x128xf32>
    %3 = tpu.matmul %1, %2, %cst {dimension_numbers = #tpu.dot_dimension_numbers<[1], [0], [0], [1], [0, 0, 1, 1], [], []>} : vector<8x8xbf16>, vector<8x128xbf16>, vector<8x128xf32> -> vector<8x128xf32>
    %c0_3 = arith.constant 0 : index
    %c0_4 = arith.constant 0 : index
    %4 = vector.load %arg3[%c0_3, %c0_4] : memref<1x128xf32, #tpu.memory_space<vmem>>, vector<1x128xf32>
    %5 = vector.broadcast %4 : vector<1x128xf32> to vector<8x128xf32>
    %6 = arith.addf %3, %5 : vector<8x128xf32>
    %cst_5 = arith.constant 0.000000e+00 : f32
    %7 = vector.broadcast %cst_5 : f32 to vector<8x128xf32>
    %8 = arith.maximumf %6, %7 : vector<8x128xf32>
    %9 = arith.truncf %8 : vector<8x128xf32> to vector<8x128xbf16>
    %c0_6 = arith.constant 0 : index
    %c0_7 = arith.constant 0 : index
    %10 = vector.load %arg4[%c0_6, %c0_7] : memref<128x128xbf16, #tpu.memory_space<vmem>>, vector<128x128xbf16>
    %cst_8 = arith.constant dense<0.000000e+00> : vector<8x128xf32>
    %11 = tpu.matmul %9, %10, %cst_8 {dimension_numbers = #tpu.dot_dimension_numbers<[1], [0], [0], [1], [0, 0, 1, 1], [], []>} : vector<8x128xbf16>, vector<128x128xbf16>, vector<8x128xf32> -> vector<8x128xf32>
    %c0_9 = arith.constant 0 : index
    %c0_10 = arith.constant 0 : index
    %12 = vector.load %arg5[%c0_9, %c0_10] : memref<1x128xf32, #tpu.memory_space<vmem>>, vector<1x128xf32>
    %13 = vector.broadcast %12 : vector<1x128xf32> to vector<8x128xf32>
    %14 = arith.addf %11, %13 : vector<8x128xf32>
    %cst_11 = arith.constant 0.000000e+00 : f32
    %15 = vector.broadcast %cst_11 : f32 to vector<8x128xf32>
    %16 = arith.maximumf %14, %15 : vector<8x128xf32>
    %17 = arith.truncf %16 : vector<8x128xf32> to vector<8x128xbf16>
    %c0_12 = arith.constant 0 : index
    %c0_13 = arith.constant 0 : index
    %18 = vector.load %arg6[%c0_12, %c0_13] : memref<128x128xbf16, #tpu.memory_space<vmem>>, vector<128x128xbf16>
    %cst_14 = arith.constant dense<0.000000e+00> : vector<8x128xf32>
    %19 = tpu.matmul %17, %18, %cst_14 {dimension_numbers = #tpu.dot_dimension_numbers<[1], [0], [0], [1], [0, 0, 1, 1], [], []>} : vector<8x128xbf16>, vector<128x128xbf16>, vector<8x128xf32> -> vector<8x128xf32>
    %c0_15 = arith.constant 0 : index
    %c0_16 = arith.constant 0 : index
    %20 = vector.load %arg7[%c0_15, %c0_16] : memref<1x128xf32, #tpu.memory_space<vmem>>, vector<1x128xf32>
    %21 = vector.broadcast %20 : vector<1x128xf32> to vector<8x128xf32>
    %22 = arith.addf %19, %21 : vector<8x128xf32>
    %c0_17 = arith.constant 0 : index
    %c0_18 = arith.constant 0 : index
    %23 = vector.load %arg8[%c0_17, %c0_18] : memref<8x128xf32, #tpu.memory_space<vmem>>, vector<8x128xf32>
    tpu.vector_store %arg8[%c0_17, %c0_18], %22 {strides = array<i32>} : memref<8x128xf32, #tpu.memory_space<vmem>>, vector<8x128xf32>,
    return
  }
  func.func @transform_0(%arg0: i32) -> (i32, i32) {
    %c0_i32 = arith.constant 0 : i32
    %c0_i32_0 = arith.constant 0 : i32
    return %arg0, %c0_i32 : i32, i32
  }
  func.func @transform_1(%arg0: i32) -> (i32, i32) {
    %c0_i32 = arith.constant 0 : i32
    %c0_i32_0 = arith.constant 0 : i32
    %c0_i32_1 = arith.constant 0 : i32
    return %c0_i32, %c0_i32_0 : i32, i32
  }
  func.func @transform_2(%arg0: i32) -> (i32, i32) {
    %c0_i32 = arith.constant 0 : i32
    %c0_i32_0 = arith.constant 0 : i32
    %c0_i32_1 = arith.constant 0 : i32
    return %c0_i32, %c0_i32_0 : i32, i32
  }
  func.func @transform_3(%arg0: i32) -> (i32, i32) {
    %c0_i32 = arith.constant 0 : i32
    %c0_i32_0 = arith.constant 0 : i32
    %c0_i32_1 = arith.constant 0 : i32
    return %c0_i32, %c0_i32_0 : i32, i32
  }
  func.func @transform_4(%arg0: i32) -> (i32, i32) {
    %c0_i32 = arith.constant 0 : i32
    %c0_i32_0 = arith.constant 0 : i32
    %c0_i32_1 = arith.constant 0 : i32
    return %c0_i32, %c0_i32_0 : i32, i32
  }
  func.func @transform_5(%arg0: i32) -> (i32, i32) {
    %c0_i32 = arith.constant 0 : i32
    %c0_i32_0 = arith.constant 0 : i32
    %c0_i32_1 = arith.constant 0 : i32
    return %c0_i32, %c0_i32_0 : i32, i32
  }
  func.func @transform_6(%arg0: i32) -> (i32, i32) {
    %c0_i32 = arith.constant 0 : i32
    %c0_i32_0 = arith.constant 0 : i32
    %c0_i32_1 = arith.constant 0 : i32
    return %c0_i32, %c0_i32_0 : i32, i32
  }
  func.func @transform_7(%arg0: i32) -> (i32, i32) {
    %c0_i32 = arith.constant 0 : i32
    %c0_i32_0 = arith.constant 0 : i32
    return %arg0, %c0_i32 : i32, i32
  }
}

</mosaic_0001>

<llo_original>
// kernel: dqn_forward.1
$region0: #{dqn_forward.1}
  #allocation0 [shape = 'u32[]', space=smem, size = 0x4, offset = 0x4, fixed_abs, tag = 'smem constant byte address 0x4 - core index']
  #allocation1 [shape = 'u32[72,128]{1,0:T(1,128)}', space=vmem, size = 0x9000, scoped, tag = 'internal scratch']
  %s0 = inlined_call_operand.vmem [shape: f32[8,8], index: 0, kind: input, shape index: {}]
  %s1 = inlined_call_operand.vmem [shape: bf16[8,128], index: 1, kind: input, shape index: {}]
  %s2 = inlined_call_operand.vmem [shape: f32[1,128], index: 2, kind: input, shape index: {}]
  %s3 = inlined_call_operand.hbm [shape: bf16[128,128], index: 3, kind: input, shape index: {}]
  %s4 = inlined_call_operand.vmem [shape: f32[1,128], index: 4, kind: input, shape index: {}]
  %s5 = inlined_call_operand.hbm [shape: bf16[128,128], index: 5, kind: input, shape index: {}]
  %s6 = inlined_call_operand.vmem [shape: f32[1,128], index: 6, kind: input, shape index: {}]
  %s7 = inlined_call_operand.vmem [shape: f32[8,128], index: 7, kind: output, shape index: {}]
  %s8 = sld [smem:[#allocation0]]
  $region46: #{dqn_forward.1} parent=0
    _
  %s10 = ssub.s32 1, %s8
  %s11 = scalar_select 0, %s10, %s8
  $region1: #{dqn_forward.1} parent=0
    #allocation2 [shape = 'u8[32768]{0}', space=vmem, size = 0x8000, scoped, tag = 'input window, operand 3, single buffered']
    #allocation3 [shape = 's32[1]{0}', space=sflag, size = 0x4, scoped, tag = 'scoped memory for dqn_forward.1']
    #allocation4 [shape = 'u8[32768]{0}', space=vmem, size = 0x8000, scoped, tag = 'input window, operand 5, single buffered']
    #allocation5 [shape = 's32[1]{0}', space=sflag, size = 0x4, scoped, tag = 'scoped memory for dqn_forward.1']
    %12 = vsyncpa [#allocation3], 0
    %13 = vsyncpa [#allocation5], 0
    // Predicated region
    $region2: #{dqn_forward.1} parent=1 // pred_check
      _
    $region3: #{dqn_forward.1} parent=1 // pred_check_branch
      %15 = sbr.rel (0) target = $region5
    $region4: #{dqn_forward.1} parent=1 // pred_region
      _
    $region5: #{dqn_forward.1} parent=1 // pred_fallthru
      _
    // Predicated region
    $region6: #{dqn_forward.1} parent=1 // pred_check
      _
    $region7: #{dqn_forward.1} parent=1 // pred_check_branch
      %17 = sbr.rel (0) target = $region9
    $region8: #{dqn_forward.1} parent=1 // pred_region
      _
    $region9: #{dqn_forward.1} parent=1 // pred_fallthru
      _
    // Predicated region
    $region10: #{dqn_forward.1} parent=1 // pred_check
      _
    $region11: #{dqn_forward.1} parent=1 // pred_check_branch
      %19 = sbr.rel (0) target = $region13
    $region12: #{dqn_forward.1} parent=1 // pred_region
      _
    $region13: #{dqn_forward.1} parent=1 // pred_fallthru
      _
    // Predicated region
    $region14: #{dqn_forward.1} parent=1 // pred_check
      _
    $region15: #{dqn_forward.1} parent=1 // pred_check_branch
      %21 = sbr.rel (0) target = $region17
    $region16: #{dqn_forward.1} parent=1 // pred_region
      %23 = vsyncadd [#allocation3], 0
      %s24 = sshll.u32 %s3, 4
      %s25 = int_to_ptr.hbm [resolvable:$true] %s24
      %s26 = sshll.u32 [#allocation2], 4
      %s27 = int_to_ptr.vmem [resolvable:$true] %s26
      %32 = dma.hbm_to_vmem [thread:$0]  %s25, 1024, %s27, [#allocation3], 64, 64, 4
    $region17: #{dqn_forward.1} parent=1 // pred_fallthru
      _
    // Predicated region
    $region18: #{dqn_forward.1} parent=1 // pred_check
      _
    $region19: #{dqn_forward.1} parent=1 // pred_check_branch
      %34 = sbr.rel (0) target = $region21
    $region20: #{dqn_forward.1} parent=1 // pred_region
      _
    $region21: #{dqn_forward.1} parent=1 // pred_fallthru
      _
    // Predicated region
    $region22: #{dqn_forward.1} parent=1 // pred_check
      _
    $region23: #{dqn_forward.1} parent=1 // pred_check_branch
      %36 = sbr.rel (0) target = $region25
    $region24: #{dqn_forward.1} parent=1 // pred_region
      %38 = vsyncadd [#allocation5], 0
      %s39 = sshll.u32 %s5, 4
      %s40 = int_to_ptr.hbm [resolvable:$true] %s39
      %s41 = sshll.u32 [#allocation4], 4
      %s42 = int_to_ptr.vmem [resolvable:$true] %s41
      %47 = dma.hbm_to_vmem [thread:$0]  %s40, 1024, %s42, [#allocation5], 64, 64, 4
    $region25: #{dqn_forward.1} parent=1 // pred_fallthru
      _
    // Predicated region
    $region26: #{dqn_forward.1} parent=1 // pred_check
      _
    $region27: #{dqn_forward.1} parent=1 // pred_check_branch
      %49 = sbr.rel (0) target = $region29
    $region28: #{dqn_forward.1} parent=1 // pred_region
      _
    $region29: #{dqn_forward.1} parent=1 // pred_fallthru
      _
    // Predicated region
    $region30: #{dqn_forward.1} parent=1 // pred_check
      _
    $region31: #{dqn_forward.1} parent=1 // pred_check_branch
      %51 = sbr.rel (0) target = $region33
    $region32: #{dqn_forward.1} parent=1 // pred_region
      %53 = dma.done [#allocation3], 1024
    $region33: #{dqn_forward.1} parent=1 // pred_fallthru
      _
    // Predicated region
    $region34: #{dqn_forward.1} parent=1 // pred_check
      _
    $region35: #{dqn_forward.1} parent=1 // pred_check_branch
      %55 = sbr.rel (0) target = $region37
    $region36: #{dqn_forward.1} parent=1 // pred_region
      %57 = dma.done [#allocation5], 1024
    $region37: #{dqn_forward.1} parent=1 // pred_fallthru
      _
    %v59 = vld [vmem:[%s0] sm:$0xff]
    %v60 = vpack.c.bf16 %v59, %v59
    %v61 = vld [vmem:[%s1] sm:$0xf]
    %v62 = vld [vmem:[%s2] sm:$0x1]
    %v64 = vperm.slane %v62, 0
    %vm66 = vcmask 64512
    %v68 = vsel %vm66, %v60, 0
    %vm70 = vcmask 1043456
    %v72 = vsel %vm70, %v61, 0
    %74 = vmatpush.bf16.msra.mxu0 0
    %75 = vmatpush.bf16.msra.mxu0 0
    %76 = vmatpush.bf16.msra.mxu0 0
    %77 = vmatpush.bf16.msra.mxu0 0
    %78 = vmatpush.bf16.msra.mxu0 0
    %79 = vmatpush.bf16.msra.mxu0 0
    %80 = vmatpush.bf16.msra.mxu0 0
    %81 = vmatpush.bf16.msra.mxu0 %v72
    %82 = vmatmul.bf16.gmra.mxu0 %v68
    %v83 = vpop.f32.mrf.mxu0
    %v84 = vadd.f32 %v64, %v83
    %v85 = vpop.f32.mrf.mxu0
    %86 = vdwg.mxu0
    %v87 = vmax.f32 %v84, 0.0
    %v88 = vpack.c.bf16 %v87, %v87
    %v89 = vld [vmem:[#allocation2] sm:$0xf]
    %v90 = vld [vmem:[#allocation2 + $0x4] sm:$0xf]
    %v91 = vld [vmem:[#allocation2 + $0x8] sm:$0xf]
    %v92 = vld [vmem:[#allocation2 + $0xc] sm:$0xf]
    %v93 = vld [vmem:[#allocation2 + $0x10] sm:$0xf]
    %v94 = vld [vmem:[#allocation2 + $0x14] sm:$0xf]
    %v95 = vld [vmem:[#allocation2 + $0x18] sm:$0xf]
    %v96 = vld [vmem:[#allocation2 + $0x1c] sm:$0xf]
    %v97 = vld [vmem:[#allocation2 + $0x20] sm:$0xf]
    %v98 = vld [vmem:[#allocation2 + $0x24] sm:$0xf]
    %v99 = vld [vmem:[#allocation2 + $0x28] sm:$0xf]
    %v100 = vld [vmem:[#allocation2 + $0x2c] sm:$0xf]
    %v101 = vld [vmem:[#allocation2 + $0x30] sm:$0xf]
    %v102 = vld [vmem:[#allocation2 + $0x34] sm:$0xf]
    %v103 = vld [vmem:[#allocation2 + $0x38] sm:$0xf]
    %v104 = vld [vmem:[#allocation2 + $0x3c] sm:$0xf]
    %v105 = vld [vmem:[%s4] sm:$0x1]
    %v107 = vperm.slane %v105, 0
    %v125 = vunpack.c.l.b16 %v89
    %v126 = vunpack.c.l.b16 %v90
    %v127 = vunpack.c.l.b16 %v91
    %v128 = vunpack.c.l.b16 %v92
    %v129 = vunpack.c.l.b16 %v93
    %v130 = vunpack.c.l.b16 %v94
    %v131 = vunpack.c.l.b16 %v95
    %v132 = vunpack.c.l.b16 %v96
    %v133 = vunpack.c.l.b16 %v97
    %v134 = vunpack.c.l.b16 %v98
    %v135 = vunpack.c.l.b16 %v99
    %v136 = vunpack.c.l.b16 %v100
    %v137 = vunpack.c.l.b16 %v101
    %v138 = vunpack.c.l.b16 %v102
    %v139 = vunpack.c.l.b16 %v103
    %v140 = vunpack.c.l.b16 %v104
    %v141 = vpack.c.b16 %v126, %v125
    %v142 = vpack.c.b16 %v128, %v127
    %v143 = vpack.c.b16 %v130, %v129
    %v144 = vpack.c.b16 %v132, %v131
    %v145 = vpack.c.b16 %v134, %v133
    %v146 = vpack.c.b16 %v136, %v135
    %v147 = vpack.c.b16 %v138, %v137
    %v148 = vpack.c.b16 %v140, %v139
    %157 = vmatpush.bf16.msra.mxu0 %v148
    %158 = vmatpush.bf16.msra.mxu0 %v147
    %159 = vmatpush.bf16.msra.mxu0 %v146
    %160 = vmatpush.bf16.msra.mxu0 %v145
    %161 = vmatpush.bf16.msra.mxu0 %v144
    %162 = vmatpush.bf16.msra.mxu0 %v143
    %163 = vmatpush.bf16.msra.mxu0 %v142
    %164 = vmatpush.bf16.msra.mxu0 %v141
    %165 = vmatmul.bf16.gmra.mxu0 %v88
    %v166 = vpop.f32.mrf.mxu0
    %v167 = vadd.f32 %v107, %v166
    %v168 = vpop.f32.mrf.mxu0
    %169 = vdwg.mxu0
    %v170 = vmax.f32 %v167, 0.0
    %v171 = vpack.c.bf16 %v170, %v170
    %v172 = vld [vmem:[#allocation4] sm:$0xf]
    %v173 = vld [vmem:[#allocation4 + $0x4] sm:$0xf]
    %v174 = vld [vmem:[#allocation4 + $0x8] sm:$0xf]
    %v175 = vld [vmem:[#allocation4 + $0xc] sm:$0xf]
    %v176 = vld [vmem:[#allocation4 + $0x10] sm:$0xf]
    %v177 = vld [vmem:[#allocation4 + $0x14] sm:$0xf]
    %v178 = vld [vmem:[#allocation4 + $0x18] sm:$0xf]
    %v179 = vld [vmem:[#allocation4 + $0x1c] sm:$0xf]
    %v180 = vld [vmem:[#allocation4 + $0x20] sm:$0xf]
    %v181 = vld [vmem:[#allocation4 + $0x24] sm:$0xf]
    %v182 = vld [vmem:[#allocation4 + $0x28] sm:$0xf]
    %v183 = vld [vmem:[#allocation4 + $0x2c] sm:$0xf]
    %v184 = vld [vmem:[#allocation4 + $0x30] sm:$0xf]
    %v185 = vld [vmem:[#allocation4 + $0x34] sm:$0xf]
    %v186 = vld [vmem:[#allocation4 + $0x38] sm:$0xf]
    %v187 = vld [vmem:[#allocation4 + $0x3c] sm:$0xf]
    %v188 = vld [vmem:[%s6] sm:$0x1]
    %v190 = vperm.slane %v188, 0
    %v208 = vunpack.c.l.b16 %v172
    %v209 = vunpack.c.l.b16 %v173
    %v210 = vunpack.c.l.b16 %v174
    %v211 = vunpack.c.l.b16 %v175
    %v212 = vunpack.c.l.b16 %v176
    %v213 = vunpack.c.l.b16 %v177
    %v214 = vunpack.c.l.b16 %v178
    %v215 = vunpack.c.l.b16 %v179
    %v216 = vunpack.c.l.b16 %v180
    %v217 = vunpack.c.l.b16 %v181
    %v218 = vunpack.c.l.b16 %v182
    %v219 = vunpack.c.l.b16 %v183
    %v220 = vunpack.c.l.b16 %v184
    %v221 = vunpack.c.l.b16 %v185
    %v222 = vunpack.c.l.b16 %v186
    %v223 = vunpack.c.l.b16 %v187
    %v224 = vpack.c.b16 %v209, %v208
    %v225 = vpack.c.b16 %v211, %v210
    %v226 = vpack.c.b16 %v213, %v212
    %v227 = vpack.c.b16 %v215, %v214
    %v228 = vpack.c.b16 %v217, %v216
    %v229 = vpack.c.b16 %v219, %v218
    %v230 = vpack.c.b16 %v221, %v220
    %v231 = vpack.c.b16 %v223, %v222
    %240 = vmatpush.bf16.msra.mxu0 %v231
    %241 = vmatpush.bf16.msra.mxu0 %v230
    %242 = vmatpush.bf16.msra.mxu0 %v229
    %243 = vmatpush.bf16.msra.mxu0 %v228
    %244 = vmatpush.bf16.msra.mxu0 %v227
    %245 = vmatpush.bf16.msra.mxu0 %v226
    %246 = vmatpush.bf16.msra.mxu0 %v225
    %247 = vmatpush.bf16.msra.mxu0 %v224
    %248 = vmatmul.bf16.gmra.mxu0 %v171
    %v249 = vpop.f32.mrf.mxu0
    %v250 = vadd.f32 %v190, %v249
    %v251 = vpop.f32.mrf.mxu0
    %252 = vdwg.mxu0
    %253 = vst [vmem:[%s7] sm:$0xff] %v250
    // Predicated region
    $region38: #{dqn_forward.1} parent=1 // pred_check
      _
    $region39: #{dqn_forward.1} parent=1 // pred_check_branch
      %255 = sbr.rel (0) target = $region41
    $region40: #{dqn_forward.1} parent=1 // pred_region
      _
    $region41: #{dqn_forward.1} parent=1 // pred_fallthru
      _
    // Predicated region
    $region42: #{dqn_forward.1} parent=1 // pred_check
      _
    $region43: #{dqn_forward.1} parent=1 // pred_check_branch
      %257 = sbr.rel (0) target = $region45
    $region44: #{dqn_forward.1} parent=1 // pred_region
      _
    $region45: #{dqn_forward.1} parent=1 // pred_fallthru
      _
    %258 = vsyncpa [#allocation3], 1
    %259 = vsyncpa [#allocation5], 1

</llo_original>
